<compile_context>
chip_gen: v7x
topology: tpu7x:2x2x1
jax: 0.10.0
libtpu: 0.0.40
codegen_flags: <defaults>
</compile_context>

<pallas_src>
import jax
import jax.numpy as jnp
import numpy as np
from jax.experimental import pallas as pl
from jax.experimental.pallas import tpu as pltpu


def lstm_kernel(x_ref, w_ref, s0_ref, y_ref, s_out_ref):
    """Whole LSTM + FC head in a single invocation (no grid).

    x_ref    : (B, T, E)       batch-first input, as the module receives it
    w_ref    : (E+H+3, 4H)     packed parameters:
                 rows [0, E)     W_ih^T
                 rows [E, E+H)   W_hh^T
                 row  E+H        b_ih + b_hh
                 row  E+H+1      [w_fc | 0 ...]   (lanes [0, H))
                 row  E+H+2      [b_fc | 0 ...]   (lane 0)
    s0_ref   : (2, B, H)        initial (h0, c0)
    y_ref    : (B, 1)           FC head output
    s_out_ref: (2, B, H)        final (h_T, c_T)
    """
    B, T, E = x_ref.shape
    H = s0_ref.shape[-1]
    G = 4 * H

    # ---- Load packed parameters once (one input DMA carried all weights) ----
    wih = w_ref[0:E, :]                        # (E, G)
    whh = w_ref[E:E + H, :]                    # (H, G)
    bias = w_ref[E + H:E + H + 1, :]           # (1, G)
    fcw = w_ref[E + H + 1:E + H + 2, 0:H]      # (1, H)
    fcb = w_ref[E + H + 2:E + H + 3, 0:1]      # (1, 1)

    # ---- Prologue: hoisted input projection, one MXU call for all T steps ---
    # (B,T,E) -> (B*T,E) is a layout no-op (leading-dim collapse, lane dim kept).
    x2d = x_ref[...].reshape(B * T, E)
    gx = jnp.dot(x2d, wih, preferred_element_type=jnp.float32) + bias   # (B*T, G)
    gx = gx.reshape(B, T, G)                   # batch-major gate slab

    h = s0_ref[0]                              # (B, H)
    c = s0_ref[1]                              # (B, H)

    # ---- Recurrence: fully unrolled (T=8 static -> static slices). Only the
    # h @ W_hh^T matmul and the gate math sit on the serial dependence chain;
    # the gx[:, t, :] extraction depends only on the prologue result, so the
    # scheduler overlaps it with the previous step's MXU latency.
    # TODO(synk): if T grows past ~16, switch to lax.fori_loop(unroll=2..4).
    for t in range(T):
        gates = gx[:, t, :] + jnp.dot(h, whh,
                                      preferred_element_type=jnp.float32)  # (B, G)

        # One sigmoid + one tanh over the full 4H lanes (2 EUP pushes/step);
        # each gate is then a single lane-rotate+mask of the activated vreg.
        sig = jax.nn.sigmoid(gates)            # (B, G)
        th = jnp.tanh(gates)                   # (B, G)
        i_g = sig[:, 0:H]
        f_g = sig[:, H:2 * H]
        g_g = th[:, 2 * H:3 * H]
        o_g = sig[:, 3 * H:4 * H]

        c = f_g * c + i_g * g_g
        h = o_g * jnp.tanh(c)

    # ---- Epilogue (exactly once): packed state writeback + FC head as a
    # lane reduction (avoids an N=1 MXU push). ----
    s_out_ref[0] = h
    s_out_ref[1] = c
    y_ref[...] = jnp.sum(h * fcw, axis=-1, keepdims=True) + fcb


def prepare_params(params):
    """One-time packing of every parameter into a single (E+H+3, 4H) slab.

    Run once at model-setup time, so the per-call forward does no weight
    transposes / bias adds and issues a single weight DMA.
    """
    w_ih = jnp.asarray(params["w_ih"], jnp.float32)    # (4H, E) PyTorch layout
    w_hh = jnp.asarray(params["w_hh"], jnp.float32)    # (4H, H)
    G, _E = w_ih.shape
    H = w_hh.shape[1]
    assert G == 4 * H
    bias = (params["b_ih"] + params["b_hh"]).reshape(1, G).astype(jnp.float32)
    fc_row = jnp.zeros((1, G), jnp.float32).at[0, :H].set(
        jnp.asarray(params["w_fc"], jnp.float32).reshape(H))
    fcb_row = jnp.zeros((1, G), jnp.float32).at[0, 0].set(
        jnp.asarray(params["b_fc"], jnp.float32)[0])
    return jnp.concatenate([w_ih.T, w_hh.T, bias, fc_row, fcb_row], axis=0)


@jax.jit
def lstm_forward(x, w_pack, state0):
    """x: (B,T,E) f32; w_pack from prepare_params; state0: (2,B,H) = (h0,c0)."""
    B, T, E = x.shape
    H = state0.shape[-1]
    assert state0.shape == (2, B, H)
    assert w_pack.shape == (E + H + 3, 4 * H)

    vmem = pl.BlockSpec(memory_space=pltpu.MemorySpace.VMEM)
    y, s_fin = pl.pallas_call(
        lstm_kernel,
        out_shape=(jax.ShapeDtypeStruct((B, 1), jnp.float32),
                   jax.ShapeDtypeStruct((2, B, H), jnp.float32)),
        in_specs=[vmem, vmem, vmem],
        out_specs=(vmem, vmem),
        # TODO(synk): for streaming inference, alias state0 -> s_fin via
        # input_output_aliases={2: 1} to reuse the state buffer across calls.
    )(x, w_pack, state0)

    # Match PyTorch return convention: hidden/cell are (num_layers=1, B, H).
    return y, s_fin[0:1], s_fin[1:2]


def ref_forward(x, params, state0):
    """Pure-JAX reference (same math / association order) for correctness."""
    H = params["w_hh"].shape[1]
    wih, whh = params["w_ih"], params["w_hh"]
    b = params["b_ih"] + params["b_hh"]

    def step(carry, x_t):
        h, c = carry
        gates = (x_t @ wih.T + b) + h @ whh.T
        i = jax.nn.sigmoid(gates[:, :H])
        f = jax.nn.sigmoid(gates[:, H:2 * H])
        g = jnp.tanh(gates[:, 2 * H:3 * H])
        o = jax.nn.sigmoid(gates[:, 3 * H:])
        c = f * c + i * g
        h = o * jnp.tanh(c)
        return (h, c), None

    (h, c), _ = jax.lax.scan(step, (state0[0], state0[1]),
                             jnp.transpose(x, (1, 0, 2)))
    y = jnp.sum(h * params["w_fc"][0], axis=-1, keepdims=True) + params["b_fc"]
    return y, h[None], c[None]


if __name__ == "__main__":
    B, T, E, H = 2, 8, 16, 32   # batch, seq, emb_dim, hid_dim
    # TODO(synk): at B=2 the MXU and most vreg lanes are idle; for throughput,
    # batch many sequences (B >= 128) and add a parallel batch grid axis so
    # v7x's second TensorCore is used — the kernel math is batch-agnostic.

    key = jax.random.PRNGKey(0)
    kx, ks, k1, k2, k3, k4, k5, k6 = jax.random.split(key, 8)

    x = jax.random.normal(kx, (B, T, E), jnp.float32)
    # The module draws h0/c0 ~ randn inside forward; draw both in one array so
    # the state arrives in a single DMA.
    state0 = jax.random.normal(ks, (2, B, H), jnp.float32)

    bound = 1.0 / float(np.sqrt(H))  # PyTorch default LSTM/Linear init range
    params = {
        "w_ih": jax.random.uniform(k1, (4 * H, E), jnp.float32, -bound, bound),
        "w_hh": jax.random.uniform(k2, (4 * H, H), jnp.float32, -bound, bound),
        "b_ih": jax.random.uniform(k3, (4 * H,), jnp.float32, -bound, bound),
        "b_hh": jax.random.uniform(k4, (4 * H,), jnp.float32, -bound, bound),
        "w_fc": jax.random.uniform(k5, (1, H), jnp.float32, -bound, bound),
        "b_fc": jax.random.uniform(k6, (1,), jnp.float32, -bound, bound),
    }
    w_pack = prepare_params(params)   # one-time packing, outside the hot path

    y, h_fin, c_fin = jax.block_until_ready(lstm_forward(x, w_pack, state0))
    y_r, h_r, c_r = jax.block_until_ready(ref_forward(x, params, state0))

    assert y.shape == (B, 1) and h_fin.shape == (1, B, H) and c_fin.shape == (1, B, H)
    np.testing.assert_allclose(np.asarray(y), np.asarray(y_r), rtol=1e-5, atol=1e-5)
    np.testing.assert_allclose(np.asarray(h_fin), np.asarray(h_r), rtol=1e-5, atol=1e-5)
    np.testing.assert_allclose(np.asarray(c_fin), np.asarray(c_r), rtol=1e-5, atol=1e-5)

    print("KERNEL_OK")
</pallas_src>

<mosaic_0001>
module attributes {stable_mosaic.version = 11 : i64} {
  func.func @lstm_kernel(%arg0: memref<2x8x16xf32, #tpu.memory_space<vmem>>, %arg1: memref<51x128xf32, #tpu.memory_space<vmem>>, %arg2: memref<2x2x32xf32, #tpu.memory_space<vmem>>, %arg3: memref<2x1xf32, #tpu.memory_space<vmem>>, %arg4: memref<2x2x32xf32, #tpu.memory_space<vmem>>) attributes {dimension_semantics = [], scalar_prefetch = 0 : i64, scratch_operands = 0 : i64, tpu.core_type = #tpu.core_type<tc>} {
    %c0 = arith.constant 0 : index
    %c0_0 = arith.constant 0 : index
    %0 = vector.load %arg1[%c0, %c0_0] : memref<51x128xf32, #tpu.memory_space<vmem>>, vector<16x128xf32>
    %c16 = arith.constant 16 : index
    %c0_1 = arith.constant 0 : index
    %1 = vector.load %arg1[%c16, %c0_1] : memref<51x128xf32, #tpu.memory_space<vmem>>, vector<32x128xf32>
    %c48 = arith.constant 48 : index
    %c0_2 = arith.constant 0 : index
    %2 = vector.load %arg1[%c48, %c0_2] : memref<51x128xf32, #tpu.memory_space<vmem>>, vector<1x128xf32>
    %c49 = arith.constant 49 : index
    %c0_3 = arith.constant 0 : index
    %3 = vector.load %arg1[%c49, %c0_3] : memref<51x128xf32, #tpu.memory_space<vmem>>, vector<1x32xf32>
    %c50 = arith.constant 50 : index
    %c0_4 = arith.constant 0 : index
    %4 = vector.load %arg1[%c50, %c0_4] : memref<51x128xf32, #tpu.memory_space<vmem>>, vector<1x1xf32>
    %c0_5 = arith.constant 0 : index
    %c0_6 = arith.constant 0 : index
    %c0_7 = arith.constant 0 : index
    %5 = vector.load %arg0[%c0_5, %c0_6, %c0_7] : memref<2x8x16xf32, #tpu.memory_space<vmem>>, vector<2x8x16xf32>
    %6 = vector.shape_cast %5 : vector<2x8x16xf32> to vector<16x16xf32>
    %cst = arith.constant dense<0.000000e+00> : vector<16x128xf32>
    %7 = tpu.matmul %6, %0, %cst {dimension_numbers = #tpu.dot_dimension_numbers<[1], [0], [0], [1], [0, 0, 1, 1], [], []>} : vector<16x16xf32>, vector<16x128xf32>, vector<16x128xf32> -> vector<16x128xf32>
    %8 = vector.broadcast %2 : vector<1x128xf32> to vector<16x128xf32>
    %9 = arith.addf %7, %8 : vector<16x128xf32>
    %10 = vector.shape_cast %9 : vector<16x128xf32> to vector<2x8x128xf32>
    %c0_8 = arith.constant 0 : index
    %c0_9 = arith.constant 0 : index
    %c0_10 = arith.constant 0 : index
    %11 = vector.load %arg2[%c0_8, %c0_9, %c0_10] : memref<2x2x32xf32, #tpu.memory_space<vmem>>, vector<1x2x32xf32>
    %12 = vector.shape_cast %11 : vector<1x2x32xf32> to vector<2x32xf32>
    %c1 = arith.constant 1 : index
    %c0_11 = arith.constant 0 : index
    %c0_12 = arith.constant 0 : index
    %13 = vector.load %arg2[%c1, %c0_11, %c0_12] : memref<2x2x32xf32, #tpu.memory_space<vmem>>, vector<1x2x32xf32>
    %14 = vector.shape_cast %13 : vector<1x2x32xf32> to vector<2x32xf32>
    %15 = vector.extract_strided_slice %10 {offsets = [0, 0, 0], sizes = [2, 1, 128], strides = [1, 1, 1]} : vector<2x8x128xf32> to vector<2x1x128xf32>
    %16 = vector.shape_cast %15 : vector<2x1x128xf32> to vector<2x128xf32>
    %cst_13 = arith.constant dense<0.000000e+00> : vector<2x128xf32>
    %17 = tpu.matmul %12, %1, %cst_13 {dimension_numbers = #tpu.dot_dimension_numbers<[1], [0], [0], [1], [0, 0, 1, 1], [], []>} : vector<2x32xf32>, vector<32x128xf32>, vector<2x128xf32> -> vector<2x128xf32>
    %18 = arith.addf %16, %17 : vector<2x128xf32>
    %19 = arith.negf %18 : vector<2x128xf32>
    %20 = math.exp %19 : vector<2x128xf32>
    %cst_14 = arith.constant 1.000000e+00 : f32
    %21 = vector.broadcast %cst_14 : f32 to vector<2x128xf32>
    %22 = arith.addf %21, %20 : vector<2x128xf32>
    %23 = arith.divf %21, %22 : vector<2x128xf32>
    %24 = math.tanh %18 : vector<2x128xf32>
    %25 = vector.extract_strided_slice %23 {offsets = [0, 0], sizes = [2, 32], strides = [1, 1]} : vector<2x128xf32> to vector<2x32xf32>
    %26 = vector.extract_strided_slice %23 {offsets = [0, 32], sizes = [2, 32], strides = [1, 1]} : vector<2x128xf32> to vector<2x32xf32>
    %27 = vector.extract_strided_slice %24 {offsets = [0, 64], sizes = [2, 32], strides = [1, 1]} : vector<2x128xf32> to vector<2x32xf32>
    %28 = vector.extract_strided_slice %23 {offsets = [0, 96], sizes = [2, 32], strides = [1, 1]} : vector<2x128xf32> to vector<2x32xf32>
    %29 = arith.mulf %26, %14 : vector<2x32xf32>
    %30 = arith.mulf %25, %27 : vector<2x32xf32>
    %31 = arith.addf %29, %30 : vector<2x32xf32>
    %32 = math.tanh %31 : vector<2x32xf32>
    %33 = arith.mulf %28, %32 : vector<2x32xf32>
    %34 = vector.extract_strided_slice %10 {offsets = [0, 1, 0], sizes = [2, 1, 128], strides = [1, 1, 1]} : vector<2x8x128xf32> to vector<2x1x128xf32>
    %35 = vector.shape_cast %34 : vector<2x1x128xf32> to vector<2x128xf32>
    %cst_15 = arith.constant dense<0.000000e+00> : vector<2x128xf32>
    %36 = tpu.matmul %33, %1, %cst_15 {dimension_numbers = #tpu.dot_dimension_numbers<[1], [0], [0], [1], [0, 0, 1, 1], [], []>} : vector<2x32xf32>, vector<32x128xf32>, vector<2x128xf32> -> vector<2x128xf32>
    %37 = arith.addf %35, %36 : vector<2x128xf32>
    %38 = arith.negf %37 : vector<2x128xf32>
    %39 = math.exp %38 : vector<2x128xf32>
    %cst_16 = arith.constant 1.000000e+00 : f32
    %40 = vector.broadcast %cst_16 : f32 to vector<2x128xf32>
    %41 = arith.addf %40, %39 : vector<2x128xf32>
    %42 = arith.divf %40, %41 : vector<2x128xf32>
    %43 = math.tanh %37 : vector<2x128xf32>
    %44 = vector.extract_strided_slice %42 {offsets = [0, 0], sizes = [2, 32], strides = [1, 1]} : vector<2x128xf32> to vector<2x32xf32>
    %45 = vector.extract_strided_slice %42 {offsets = [0, 32], sizes = [2, 32], strides = [1, 1]} : vector<2x128xf32> to vector<2x32xf32>
    %46 = vector.extract_strided_slice %43 {offsets = [0, 64], sizes = [2, 32], strides = [1, 1]} : vector<2x128xf32> to vector<2x32xf32>
    %47 = vector.extract_strided_slice %42 {offsets = [0, 96], sizes = [2, 32], strides = [1, 1]} : vector<2x128xf32> to vector<2x32xf32>
    %48 = arith.mulf %45, %31 : vector<2x32xf32>
    %49 = arith.mulf %44, %46 : vector<2x32xf32>
    %50 = arith.addf %48, %49 : vector<2x32xf32>
    %51 = math.tanh %50 : vector<2x32xf32>
    %52 = arith.mulf %47, %51 : vector<2x32xf32>
    %53 = vector.extract_strided_slice %10 {offsets = [0, 2, 0], sizes = [2, 1, 128], strides = [1, 1, 1]} : vector<2x8x128xf32> to vector<2x1x128xf32>
    %54 = vector.shape_cast %53 : vector<2x1x128xf32> to vector<2x128xf32>
    %cst_17 = arith.constant dense<0.000000e+00> : vector<2x128xf32>
    %55 = tpu.matmul %52, %1, %cst_17 {dimension_numbers = #tpu.dot_dimension_numbers<[1], [0], [0], [1], [0, 0, 1, 1], [], []>} : vector<2x32xf32>, vector<32x128xf32>, vector<2x128xf32> -> vector<2x128xf32>
    %56 = arith.addf %54, %55 : vector<2x128xf32>
    %57 = arith.negf %56 : vector<2x128xf32>
    %58 = math.exp %57 : vector<2x128xf32>
    %cst_18 = arith.constant 1.000000e+00 : f32
    %59 = vector.broadcast %cst_18 : f32 to vector<2x128xf32>
    %60 = arith.addf %59, %58 : vector<2x128xf32>
    %61 = arith.divf %59, %60 : vector<2x128xf32>
    %62 = math.tanh %56 : vector<2x128xf32>
    %63 = vector.extract_strided_slice %61 {offsets = [0, 0], sizes = [2, 32], strides = [1, 1]} : vector<2x128xf32> to vector<2x32xf32>
    %64 = vector.extract_strided_slice %61 {offsets = [0, 32], sizes = [2, 32], strides = [1, 1]} : vector<2x128xf32> to vector<2x32xf32>
    %65 = vector.extract_strided_slice %62 {offsets = [0, 64], sizes = [2, 32], strides = [1, 1]} : vector<2x128xf32> to vector<2x32xf32>
    %66 = vector.extract_strided_slice %61 {offsets = [0, 96], sizes = [2, 32], strides = [1, 1]} : vector<2x128xf32> to vector<2x32xf32>
    %67 = arith.mulf %64, %50 : vector<2x32xf32>
    %68 = arith.mulf %63, %65 : vector<2x32xf32>
    %69 = arith.addf %67, %68 : vector<2x32xf32>
    %70 = math.tanh %69 : vector<2x32xf32>
    %71 = arith.mulf %66, %70 : vector<2x32xf32>
    %72 = vector.extract_strided_slice %10 {offsets = [0, 3, 0], sizes = [2, 1, 128], strides = [1, 1, 1]} : vector<2x8x128xf32> to vector<2x1x128xf32>
    %73 = vector.shape_cast %72 : vector<2x1x128xf32> to vector<2x128xf32>
    %cst_19 = arith.constant dense<0.000000e+00> : vector<2x128xf32>
    %74 = tpu.matmul %71, %1, %cst_19 {dimension_numbers = #tpu.dot_dimension_numbers<[1], [0], [0], [1], [0, 0, 1, 1], [], []>} : vector<2x32xf32>, vector<32x128xf32>, vector<2x128xf32> -> vector<2x128xf32>
    %75 = arith.addf %73, %74 : vector<2x128xf32>
    %76 = arith.negf %75 : vector<2x128xf32>
    %77 = math.exp %76 : vector<2x128xf32>
    %cst_20 = arith.constant 1.000000e+00 : f32
    %78 = vector.broadcast %cst_20 : f32 to vector<2x128xf32>
    %79 = arith.addf %78, %77 : vector<2x128xf32>
    %80 = arith.divf %78, %79 : vector<2x128xf32>
    %81 = math.tanh %75 : vector<2x128xf32>
    %82 = vector.extract_strided_slice %80 {offsets = [0, 0], sizes = [2, 32], strides = [1, 1]} : vector<2x128xf32> to vector<2x32xf32>
    %83 = vector.extract_strided_slice %80 {offsets = [0, 32], sizes = [2, 32], strides = [1, 1]} : vector<2x128xf32> to vector<2x32xf32>
    %84 = vector.extract_strided_slice %81 {offsets = [0, 64], sizes = [2, 32], strides = [1, 1]} : vector<2x128xf32> to vector<2x32xf32>
    %85 = vector.extract_strided_slice %80 {offsets = [0, 96], sizes = [2, 32], strides = [1, 1]} : vector<2x128xf32> to vector<2x32xf32>
    %86 = arith.mulf %83, %69 : vector<2x32xf32>
    %87 = arith.mulf %82, %84 : vector<2x32xf32>
    %88 = arith.addf %86, %87 : vector<2x32xf32>
    %89 = math.tanh %88 : vector<2x32xf32>
    %90 = arith.mulf %85, %89 : vector<2x32xf32>
    %91 = vector.extract_strided_slice %10 {offsets = [0, 4, 0], sizes = [2, 1, 128], strides = [1, 1, 1]} : vector<2x8x128xf32> to vector<2x1x128xf32>
    %92 = vector.shape_cast %91 : vector<2x1x128xf32> to vector<2x128xf32>
    %cst_21 = arith.constant dense<0.000000e+00> : vector<2x128xf32>
    %93 = tpu.matmul %90, %1, %cst_21 {dimension_numbers = #tpu.dot_dimension_numbers<[1], [0], [0], [1], [0, 0, 1, 1], [], []>} : vector<2x32xf32>, vector<32x128xf32>, vector<2x128xf32> -> vector<2x128xf32>
    %94 = arith.addf %92, %93 : vector<2x128xf32>
    %95 = arith.negf %94 : vector<2x128xf32>
    %96 = math.exp %95 : vector<2x128xf32>
    %cst_22 = arith.constant 1.000000e+00 : f32
    %97 = vector.broadcast %cst_22 : f32 to vector<2x128xf32>
    %98 = arith.addf %97, %96 : vector<2x128xf32>
    %99 = arith.divf %97, %98 : vector<2x128xf32>
    %100 = math.tanh %94 : vector<2x128xf32>
    %101 = vector.extract_strided_slice %99 {offsets = [0, 0], sizes = [2, 32], strides = [1, 1]} : vector<2x128xf32> to vector<2x32xf32>
    %102 = vector.extract_strided_slice %99 {offsets = [0, 32], sizes = [2, 32], strides = [1, 1]} : vector<2x128xf32> to vector<2x32xf32>
    %103 = vector.extract_strided_slice %100 {offsets = [0, 64], sizes = [2, 32], strides = [1, 1]} : vector<2x128xf32> to vector<2x32xf32>
    %104 = vector.extract_strided_slice %99 {offsets = [0, 96], sizes = [2, 32], strides = [1, 1]} : vector<2x128xf32> to vector<2x32xf32>
    %105 = arith.mulf %102, %88 : vector<2x32xf32>
    %106 = arith.mulf %101, %103 : vector<2x32xf32>
    %107 = arith.addf %105, %106 : vector<2x32xf32>
    %108 = math.tanh %107 : vector<2x32xf32>
    %109 = arith.mulf %104, %108 : vector<2x32xf32>
    %110 = vector.extract_strided_slice %10 {offsets = [0, 5, 0], sizes = [2, 1, 128], strides = [1, 1, 1]} : vector<2x8x128xf32> to vector<2x1x128xf32>
    %111 = vector.shape_cast %110 : vector<2x1x128xf32> to vector<2x128xf32>
    %cst_23 = arith.constant dense<0.000000e+00> : vector<2x128xf32>
    %112 = tpu.matmul %109, %1, %cst_23 {dimension_numbers = #tpu.dot_dimension_numbers<[1], [0], [0], [1], [0, 0, 1, 1], [], []>} : vector<2x32xf32>, vector<32x128xf32>, vector<2x128xf32> -> vector<2x128xf32>
    %113 = arith.addf %111, %112 : vector<2x128xf32>
    %114 = arith.negf %113 : vector<2x128xf32>
    %115 = math.exp %114 : vector<2x128xf32>
    %cst_24 = arith.constant 1.000000e+00 : f32
    %116 = vector.broadcast %cst_24 : f32 to vector<2x128xf32>
    %117 = arith.addf %116, %115 : vector<2x128xf32>
    %118 = arith.divf %116, %117 : vector<2x128xf32>
    %119 = math.tanh %113 : vector<2x128xf32>
    %120 = vector.extract_strided_slice %118 {offsets = [0, 0], sizes = [2, 32], strides = [1, 1]} : vector<2x128xf32> to vector<2x32xf32>
    %121 = vector.extract_strided_slice %118 {offsets = [0, 32], sizes = [2, 32], strides = [1, 1]} : vector<2x128xf32> to vector<2x32xf32>
    %122 = vector.extract_strided_slice %119 {offsets = [0, 64], sizes = [2, 32], strides = [1, 1]} : vector<2x128xf32> to vector<2x32xf32>
    %123 = vector.extract_strided_slice %118 {offsets = [0, 96], sizes = [2, 32], strides = [1, 1]} : vector<2x128xf32> to vector<2x32xf32>
    %124 = arith.mulf %121, %107 : vector<2x32xf32>
    %125 = arith.mulf %120, %122 : vector<2x32xf32>
    %126 = arith.addf %124, %125 : vector<2x32xf32>
    %127 = math.tanh %126 : vector<2x32xf32>
    %128 = arith.mulf %123, %127 : vector<2x32xf32>
    %129 = vector.extract_strided_slice %10 {offsets = [0, 6, 0], sizes = [2, 1, 128], strides = [1, 1, 1]} : vector<2x8x128xf32> to vector<2x1x128xf32>
    %130 = vector.shape_cast %129 : vector<2x1x128xf32> to vector<2x128xf32>
    %cst_25 = arith.constant dense<0.000000e+00> : vector<2x128xf32>
    %131 = tpu.matmul %128, %1, %cst_25 {dimension_numbers = #tpu.dot_dimension_numbers<[1], [0], [0], [1], [0, 0, 1, 1], [], []>} : vector<2x32xf32>, vector<32x128xf32>, vector<2x128xf32> -> vector<2x128xf32>
    %132 = arith.addf %130, %131 : vector<2x128xf32>
    %133 = arith.negf %132 : vector<2x128xf32>
    %134 = math.exp %133 : vector<2x128xf32>
    %cst_26 = arith.constant 1.000000e+00 : f32
    %135 = vector.broadcast %cst_26 : f32 to vector<2x128xf32>
    %136 = arith.addf %135, %134 : vector<2x128xf32>
    %137 = arith.divf %135, %136 : vector<2x128xf32>
    %138 = math.tanh %132 : vector<2x128xf32>
    %139 = vector.extract_strided_slice %137 {offsets = [0, 0], sizes = [2, 32], strides = [1, 1]} : vector<2x128xf32> to vector<2x32xf32>
    %140 = vector.extract_strided_slice %137 {offsets = [0, 32], sizes = [2, 32], strides = [1, 1]} : vector<2x128xf32> to vector<2x32xf32>
    %141 = vector.extract_strided_slice %138 {offsets = [0, 64], sizes = [2, 32], strides = [1, 1]} : vector<2x128xf32> to vector<2x32xf32>
    %142 = vector.extract_strided_slice %137 {offsets = [0, 96], sizes = [2, 32], strides = [1, 1]} : vector<2x128xf32> to vector<2x32xf32>
    %143 = arith.mulf %140, %126 : vector<2x32xf32>
    %144 = arith.mulf %139, %141 : vector<2x32xf32>
    %145 = arith.addf %143, %144 : vector<2x32xf32>
    %146 = math.tanh %145 : vector<2x32xf32>
    %147 = arith.mulf %142, %146 : vector<2x32xf32>
    %148 = vector.extract_strided_slice %10 {offsets = [0, 7, 0], sizes = [2, 1, 128], strides = [1, 1, 1]} : vector<2x8x128xf32> to vector<2x1x128xf32>
    %149 = vector.shape_cast %148 : vector<2x1x128xf32> to vector<2x128xf32>
    %cst_27 = arith.constant dense<0.000000e+00> : vector<2x128xf32>
    %150 = tpu.matmul %147, %1, %cst_27 {dimension_numbers = #tpu.dot_dimension_numbers<[1], [0], [0], [1], [0, 0, 1, 1], [], []>} : vector<2x32xf32>, vector<32x128xf32>, vector<2x128xf32> -> vector<2x128xf32>
    %151 = arith.addf %149, %150 : vector<2x128xf32>
    %152 = arith.negf %151 : vector<2x128xf32>
    %153 = math.exp %152 : vector<2x128xf32>
    %cst_28 = arith.constant 1.000000e+00 : f32
    %154 = vector.broadcast %cst_28 : f32 to vector<2x128xf32>
    %155 = arith.addf %154, %153 : vector<2x128xf32>
    %156 = arith.divf %154, %155 : vector<2x128xf32>
    %157 = math.tanh %151 : vector<2x128xf32>
    %158 = vector.extract_strided_slice %156 {offsets = [0, 0], sizes = [2, 32], strides = [1, 1]} : vector<2x128xf32> to vector<2x32xf32>
    %159 = vector.extract_strided_slice %156 {offsets = [0, 32], sizes = [2, 32], strides = [1, 1]} : vector<2x128xf32> to vector<2x32xf32>
    %160 = vector.extract_strided_slice %157 {offsets = [0, 64], sizes = [2, 32], strides = [1, 1]} : vector<2x128xf32> to vector<2x32xf32>
    %161 = vector.extract_strided_slice %156 {offsets = [0, 96], sizes = [2, 32], strides = [1, 1]} : vector<2x128xf32> to vector<2x32xf32>
    %162 = arith.mulf %159, %145 : vector<2x32xf32>
    %163 = arith.mulf %158, %160 : vector<2x32xf32>
    %164 = arith.addf %162, %163 : vector<2x32xf32>
    %165 = math.tanh %164 : vector<2x32xf32>
    %166 = arith.mulf %161, %165 : vector<2x32xf32>
    %c0_29 = arith.constant 0 : index
    %c0_30 = arith.constant 0 : index
    %c0_31 = arith.constant 0 : index
    %167 = vector.load %arg4[%c0_29, %c0_30, %c0_31] : memref<2x2x32xf32, #tpu.memory_space<vmem>>, vector<1x2x32xf32>
    %168 = vector.shape_cast %167 : vector<1x2x32xf32> to vector<2x32xf32>
    %169 = vector.shape_cast %166 : vector<2x32xf32> to vector<1x2x32xf32>
    tpu.vector_store %arg4[%c0_29, %c0_30, %c0_31], %169 {strides = array<i32>} : memref<2x2x32xf32, #tpu.memory_space<vmem>>, vector<1x2x32xf32>,
    %c1_32 = arith.constant 1 : index
    %c0_33 = arith.constant 0 : index
    %c0_34 = arith.constant 0 : index
    %170 = vector.load %arg4[%c1_32, %c0_33, %c0_34] : memref<2x2x32xf32, #tpu.memory_space<vmem>>, vector<1x2x32xf32>
    %171 = vector.shape_cast %170 : vector<1x2x32xf32> to vector<2x32xf32>
    %172 = vector.shape_cast %164 : vector<2x32xf32> to vector<1x2x32xf32>
    tpu.vector_store %arg4[%c1_32, %c0_33, %c0_34], %172 {strides = array<i32>} : memref<2x2x32xf32, #tpu.memory_space<vmem>>, vector<1x2x32xf32>,
    %173 = vector.broadcast %3 : vector<1x32xf32> to vector<2x32xf32>
    %174 = arith.mulf %166, %173 : vector<2x32xf32>
    %cst_35 = arith.constant dense<0.000000e+00> : vector<2xf32>
    %175 = vector.multi_reduction <add>, %174, %cst_35 [1] : vector<2x32xf32> to vector<2xf32>
    %176 = vector.shape_cast %175 : vector<2xf32> to vector<2x1xf32>
    %177 = vector.broadcast %4 : vector<1x1xf32> to vector<2x1xf32>
    %178 = arith.addf %176, %177 : vector<2x1xf32>
    %c0_36 = arith.constant 0 : index
    %c0_37 = arith.constant 0 : index
    %179 = vector.load %arg3[%c0_36, %c0_37] : memref<2x1xf32, #tpu.memory_space<vmem>>, vector<2x1xf32>
    tpu.vector_store %arg3[%c0_36, %c0_37], %178 {strides = array<i32>} : memref<2x1xf32, #tpu.memory_space<vmem>>, vector<2x1xf32>,
    return
  }
}

</mosaic_0001>

<llo_original>
// kernel: lstm_forward.1
$region0: #{lstm_forward.1}
  #allocation0 [shape = 'u32[]', space=smem, size = 0x4, offset = 0x4, fixed_abs, tag = 'smem constant byte address 0x4 - core index']
  #allocation1 [shape = 'u32[144,128]{1,0:T(1,128)}', space=vmem, size = 0x12000, scoped, tag = 'internal scratch']
  %s0 = inlined_call_operand.hbm [shape: f32[2,8,16], index: 0, kind: input, shape index: {}]
  %s1 = inlined_call_operand.hbm [shape: f32[51,128], index: 1, kind: input, shape index: {}]
  %s2 = inlined_call_operand.vmem [shape: f32[2,2,32], index: 2, kind: input, shape index: {}]
  %s3 = inlined_call_operand.vmem [shape: f32[2,1], index: 3, kind: output, shape index: {0}]
  %s4 = inlined_call_operand.vmem [shape: f32[2,2,32], index: 4, kind: output, shape index: {1}]
  %5 = xla_tuple %s3, %s4
  %s6 = sld [smem:[#allocation0]]
  $region38: #{lstm_forward.1} parent=0
    _
  %s8 = ssub.s32 1, %s6
  %s9 = scalar_select 0, %s8, %s6
  $region1: #{lstm_forward.1} parent=0
    #allocation2 [shape = 'u8[8192]{0}', space=vmem, size = 0x2000, scoped, tag = 'input window, operand 0, single buffered']
    #allocation3 [shape = 's32[1]{0}', space=sflag, size = 0x4, scoped, tag = 'scoped memory for lstm_forward.1']
    #allocation4 [shape = 'u8[28672]{0}', space=vmem, size = 0x7000, scoped, tag = 'input window, operand 1, single buffered']
    #allocation5 [shape = 's32[1]{0}', space=sflag, size = 0x4, scoped, tag = 'scoped memory for lstm_forward.1']
    %10 = vsyncpa [#allocation3], 0
    %11 = vsyncpa [#allocation5], 0
    // Predicated region
    $region2: #{lstm_forward.1} parent=1 // pred_check
      _
    $region3: #{lstm_forward.1} parent=1 // pred_check_branch
      %13 = sbr.rel (0) target = $region5
    $region4: #{lstm_forward.1} parent=1 // pred_region
      %s15 = ssub.s32 256, 256
      %16 = vsyncadd [#allocation3], %s15
      %s17 = sshll.u32 [#allocation2], 4
      %s18 = int_to_ptr.vmem [resolvable:$true] %s17
      %23 = dma.hbm_to_vmem [thread:$0]  %s0, 256, %s18, [#allocation3], 128, 128, 8
    $region5: #{lstm_forward.1} parent=1 // pred_fallthru
      _
    // Predicated region
    $region6: #{lstm_forward.1} parent=1 // pred_check
      _
    $region7: #{lstm_forward.1} parent=1 // pred_check_branch
      %25 = sbr.rel (0) target = $region9
    $region8: #{lstm_forward.1} parent=1 // pred_region
      %s27 = ssub.s32 896, 896
      %28 = vsyncadd [#allocation5], %s27
      %s29 = sshll.u32 [#allocation4], 4
      %s30 = int_to_ptr.vmem [resolvable:$true] %s29
      %35 = dma.hbm_to_vmem [thread:$0]  %s1, 896, %s30, [#allocation5], 128, 128, 8
    $region9: #{lstm_forward.1} parent=1 // pred_fallthru
      _
    // Predicated region
    $region10: #{lstm_forward.1} parent=1 // pred_check
      _
    $region11: #{lstm_forward.1} parent=1 // pred_check_branch
      %37 = sbr.rel (0) target = $region13
    $region12: #{lstm_forward.1} parent=1 // pred_region
      _
    $region13: #{lstm_forward.1} parent=1 // pred_fallthru
      _
    // Predicated region
    $region14: #{lstm_forward.1} parent=1 // pred_check
      _
    $region15: #{lstm_forward.1} parent=1 // pred_check_branch
      %39 = sbr.rel (0) target = $region17
    $region16: #{lstm_forward.1} parent=1 // pred_region
      %40 = dma.done [#allocation3], 256
    $region17: #{lstm_forward.1} parent=1 // pred_fallthru
      _
    // Predicated region
    $region18: #{lstm_forward.1} parent=1 // pred_check
      _
    $region19: #{lstm_forward.1} parent=1 // pred_check_branch
      %42 = sbr.rel (0) target = $region21
    $region20: #{lstm_forward.1} parent=1 // pred_region
      %43 = dma.done [#allocation5], 896
    $region21: #{lstm_forward.1} parent=1 // pred_fallthru
      _
    %v44 = vld [vmem:[#allocation4] sm:$0xff]
    %v45 = vld [vmem:[#allocation4 + $0x8] sm:$0xff]
    %v46 = vld [vmem:[#allocation4 + $0x10] sm:$0xff]
    %v47 = vld [vmem:[#allocation4 + $0x18] sm:$0xff]
    %v48 = vld [vmem:[#allocation4 + $0x20] sm:$0xff]
    %v49 = vld [vmem:[#allocation4 + $0x28] sm:$0xff]
    %v50 = vld [vmem:[#allocation4 + $0x30] sm:$0x1]
    %v51 = vld [vmem:[#allocation4 + $0x31] sm:$0x1]
    %v52 = vld [vmem:[#allocation4 + $0x32] sm:$0x1]
    %v53 = vld [vmem:[#allocation2] sm:$0xff]
    %v54 = vld [vmem:[#allocation2 + $0x8] sm:$0xff]
    %v55 = vlaneseq
    %v56 = vshrl.u32 %v55, 7
    %v57 = vsub.s32 0, %v56
    %v58 = vrot.slane %v50, %v57
    %vm59 = vcmask 130048
    %v61 = vsel %vm59, %v53, 0
    %v64 = vsel %vm59, %v54, 0
    %66 = vmatprep.subr.mxu0 0.0
    %67 = vmatpush1.msra.mxu0 %v44
    %68 = vmatprep.subr.mxu0 0.0
    %69 = vmatpush1.msra.mxu0 %v45
    %70 = vmatprep.subr.mxu0 0.0
    %71 = vmatpush1.msra.mxu0 0.0
    %72 = vmatprep.subr.mxu0 0.0
    %73 = vmatpush1.msra.mxu0 0.0
    %74 = vmatprep.subr.mxu0 0.0
    %75 = vmatpush1.msra.mxu0 0.0
    %76 = vmatprep.subr.mxu0 0.0
    %77 = vmatpush1.msra.mxu0 0.0
    %78 = vmatprep.subr.mxu0 0.0
    %79 = vmatpush1.msra.mxu0 0.0
    %80 = vmatprep.subr.mxu0 0.0
    %81 = vmatpush1.msra.mxu0 0.0
    %82 = vmatprep.subr.mxu0 0.0
    %83 = vmatpush1.msra.mxu0 0.0
    %84 = vmatprep.subr.mxu0 0.0
    %85 = vmatpush1.msra.mxu0 0.0
    %86 = vmatprep.subr.mxu0 0.0
    %87 = vmatpush1.msra.mxu0 0.0
    %88 = vmatprep.subr.mxu0 0.0
    %89 = vmatpush1.msra.mxu0 0.0
    %90 = vmatprep.subr.mxu0 0.0
    %91 = vmatpush1.msra.mxu0 0.0
    %92 = vmatprep.subr.mxu0 0.0
    %93 = vmatpush1.msra.mxu0 0.0
    %94 = vmatprep.subr.mxu0 0.0
    %95 = vmatpush1.msra.mxu0 0.0
    %96 = vmatprep.subr.mxu0 0.0
    %97 = vmatpush1.msra.mxu0 0.0
    %98 = vmatprep.subr.mxu0 0.0
    %99 = vmatpush1.msra.mxu0 0.0
    %100 = vmatprep.subr.mxu0 0.0
    %101 = vmatpush1.msra.mxu0 0.0
    %102 = vmatprep.subr.mxu0 0.0
    %103 = vmatpush1.msra.mxu0 0.0
    %104 = vmatprep.subr.mxu0 0.0
    %105 = vmatpush1.msra.mxu0 0.0
    %106 = vmatprep.subr.mxu0 0.0
    %107 = vmatpush1.msra.mxu0 0.0
    %108 = vmatprep.subr.mxu0 0.0
    %109 = vmatpush1.msra.mxu0 0.0
    %110 = vmatprep.subr.mxu0 0.0
    %111 = vmatpush1.msra.mxu0 0.0
    %112 = vmatprep.subr.mxu0 0.0
    %113 = vmatpush1.msra.mxu0 0.0
    %114 = vmatprep.subr.mxu0 0.0
    %115 = vmatpush1.msra.mxu0 0.0
    %116 = vmatprep.subr.mxu0 0.0
    %117 = vmatpush1.msra.mxu0 0.0
    %118 = vmatprep.subr.mxu0 0.0
    %119 = vmatpush1.msra.mxu0 0.0
    %120 = vmatprep.subr.mxu0 0.0
    %121 = vmatpush1.msra.mxu0 0.0
    %122 = vmatprep.subr.mxu0 0.0
    %123 = vmatpush1.msra.mxu0 0.0
    %124 = vmatprep.subr.mxu0 0.0
    %125 = vmatpush1.msra.mxu0 0.0
    %126 = vmatprep.subr.mxu0 0.0
    %127 = vmatpush1.msra.mxu0 0.0
    %128 = vmatprep.subr.mxu0 0.0
    %129 = vmatpush1.msra.mxu0 0.0
    %130 = vmatprep.mubr.f32.mxu0 0.0
    %131 = vmatmul.mubr.f32.gmra.mrb[0].mxu0 %v61
    %v132 = vpop.f32.mrb[0].mxu0
    %v133 = vadd.f32 %v58, %v132
    %v134 = vpop.f32.mrb[0].mxu0
    %135 = vmatprep.mubr.f32.mxu0 0.0
    %136 = vmatmul.mubr.f32.gmra.mrb[0].mxu0 %v64
    %v137 = vpop.f32.mrb[0].mxu0
    %v138 = vadd.f32 %v58, %v137
    %v139 = vpop.f32.mrb[0].mxu0
    %140 = vdwg.mxu0
    %v141 = vld [vmem:[%s2] sm:$0x3]
    %s142 = scalar_lea.vmem %s2, 2
    %v143 = vld [vmem:[%s142] sm:$0x3]
    %vm144 = vcmask 261120
    %v146 = vsel %vm144, %v141, 0
    %148 = vmatprep.subr.mxu0 0.0
    %149 = vmatpush1.msra.mxu0 %v46
    %150 = vmatprep.subr.mxu0 0.0
    %151 = vmatpush1.msra.mxu0 %v47
    %152 = vmatprep.subr.mxu0 0.0
    %153 = vmatpush1.msra.mxu0 %v48
    %154 = vmatprep.subr.mxu0 0.0
    %155 = vmatpush1.msra.mxu0 %v49
    %156 = vmatprep.subr.mxu0 0.0
    %157 = vmatpush1.msra.mxu0 0.0
    %158 = vmatprep.subr.mxu0 0.0
    %159 = vmatpush1.msra.mxu0 0.0
    %160 = vmatprep.subr.mxu0 0.0
    %161 = vmatpush1.msra.mxu0 0.0
    %162 = vmatprep.subr.mxu0 0.0
    %163 = vmatpush1.msra.mxu0 0.0
    %164 = vmatprep.subr.mxu0 0.0
    %165 = vmatpush1.msra.mxu0 0.0
    %166 = vmatprep.subr.mxu0 0.0
    %167 = vmatpush1.msra.mxu0 0.0
    %168 = vmatprep.subr.mxu0 0.0
    %169 = vmatpush1.msra.mxu0 0.0
    %170 = vmatprep.subr.mxu0 0.0
    %171 = vmatpush1.msra.mxu0 0.0
    %172 = vmatprep.subr.mxu0 0.0
    %173 = vmatpush1.msra.mxu0 0.0
    %174 = vmatprep.subr.mxu0 0.0
    %175 = vmatpush1.msra.mxu0 0.0
    %176 = vmatprep.subr.mxu0 0.0
    %177 = vmatpush1.msra.mxu0 0.0
    %178 = vmatprep.subr.mxu0 0.0
    %179 = vmatpush1.msra.mxu0 0.0
    %180 = vmatprep.subr.mxu0 0.0
    %181 = vmatpush1.msra.mxu0 0.0
    %182 = vmatprep.subr.mxu0 0.0
    %183 = vmatpush1.msra.mxu0 0.0
    %184 = vmatprep.subr.mxu0 0.0
    %185 = vmatpush1.msra.mxu0 0.0
    %186 = vmatprep.subr.mxu0 0.0
    %187 = vmatpush1.msra.mxu0 0.0
    %188 = vmatprep.subr.mxu0 0.0
    %189 = vmatpush1.msra.mxu0 0.0
    %190 = vmatprep.subr.mxu0 0.0
    %191 = vmatpush1.msra.mxu0 0.0
    %192 = vmatprep.subr.mxu0 0.0
    %193 = vmatpush1.msra.mxu0 0.0
    %194 = vmatprep.subr.mxu0 0.0
    %195 = vmatpush1.msra.mxu0 0.0
    %196 = vmatprep.subr.mxu0 0.0
    %197 = vmatpush1.msra.mxu0 0.0
    %198 = vmatprep.subr.mxu0 0.0
    %199 = vmatpush1.msra.mxu0 0.0
    %200 = vmatprep.subr.mxu0 0.0
    %201 = vmatpush1.msra.mxu0 0.0
    %202 = vmatprep.subr.mxu0 0.0
    %203 = vmatpush1.msra.mxu0 0.0
    %204 = vmatprep.subr.mxu0 0.0
    %205 = vmatpush1.msra.mxu0 0.0
    %206 = vmatprep.subr.mxu0 0.0
    %207 = vmatpush1.msra.mxu0 0.0
    %208 = vmatprep.subr.mxu0 0.0
    %209 = vmatpush1.msra.mxu0 0.0
    %210 = vmatprep.subr.mxu0 0.0
    %211 = vmatpush1.msra.mxu0 0.0
    %212 = vmatprep.mubr.f32.mxu0 0.0
    %213 = vmatmul.mubr.f32.gmra.mrb[0].mxu0 %v146
    %v214 = vpop.f32.mrb[0].mxu0
    %v215 = vadd.f32 0.0, %v214
    %v216 = vpop.f32.mrb[0].mxu0
    %217 = vdwg.mxu0
    %v219 = vrot.slane %v215, 1
    %v222 = vadd.f32 %v133, %v215
    %v223 = vadd.f32 %v138, %v219
    %v224 = vxor.u32 %v222, 2147483648
    %v225 = vxor.u32 %v223, 2147483648
    %v226 = vmul.f32 %v224, 1.442695
    %v227 = vpow.pop %v226
    %v228 = vmul.f32 %v225, 1.442695
    %v229 = vpow.pop %v228
    %v230 = vadd.f32 %v227, 1.0
    %v231 = vadd.f32 %v229, 1.0
    %v232 = vrcp.pop %v230
    %v233 = vmul.f32 1.0, %v232
    %v234 = vrcp.pop %v231
    %v235 = vmul.f32 1.0, %v234
    %v236 = vtanh.pop %v222
    %v237 = vtanh.pop %v223
    %v239 = vrot.slane %v143, 1
    %240 = vrot.lane.b32.xlu0 %v143, 32
    %v241 = vpop.permute.xlu0 %240
    %242 = vrot.lane.b32.xlu0 %v239, 32
    %v243 = vpop.permute.xlu0 %242
    %v246 = vmul.f32 %v233, %v241
    %v247 = vmul.f32 %v235, %v243
    %250 = vrot.lane.b32.xlu0 %v236, 64
    %v251 = vpop.permute.xlu0 %250
    %252 = vrot.lane.b32.xlu0 %v237, 64
    %v253 = vpop.permute.xlu0 %252
    %v256 = vmul.f32 %v233, %v251
    %v257 = vmul.f32 %v235, %v253
    %260 = vrot.lane.b32.xlu0 %v256, 32
    %v261 = vpop.permute.xlu0 %260
    %262 = vrot.lane.b32.xlu0 %v257, 32
    %v263 = vpop.permute.xlu0 %262
    %v266 = vadd.f32 %v246, %v261
    %v267 = vadd.f32 %v247, %v263
    %v268 = vtanh.pop %v266
    %v269 = vtanh.pop %v267
    %272 = vrot.lane.b32.xlu0 %v268, 64
    %v273 = vpop.permute.xlu0 %272
    %274 = vrot.lane.b32.xlu0 %v269, 64
    %v275 = vpop.permute.xlu0 %274
    %v278 = vmul.f32 %v233, %v273
    %v279 = vmul.f32 %v235, %v275
    %v282 = vrot.slane %v279, 7
    %vm283 = vcmask 1041409
    %v284 = vsel %vm283, %v282, %v278
    %285 = vrot.lane.b32.xlu0 %v284, 32
    %v286 = vpop.permute.xlu0 %285
    %v287 = vsel %vm144, %v286, 0
    %289 = vmatprep.subr.mxu0 0.0
    %290 = vmatpush1.msra.mxu0 %v46
    %291 = vmatprep.subr.mxu0 0.0
    %292 = vmatpush1.msra.mxu0 %v47
    %293 = vmatprep.subr.mxu0 0.0
    %294 = vmatpush1.msra.mxu0 %v48
    %295 = vmatprep.subr.mxu0 0.0
    %296 = vmatpush1.msra.mxu0 %v49
    %297 = vmatprep.subr.mxu0 0.0
    %298 = vmatpush1.msra.mxu0 0.0
    %299 = vmatprep.subr.mxu0 0.0
    %300 = vmatpush1.msra.mxu0 0.0
    %301 = vmatprep.subr.mxu0 0.0
    %302 = vmatpush1.msra.mxu0 0.0
    %303 = vmatprep.subr.mxu0 0.0
    %304 = vmatpush1.msra.mxu0 0.0
    %305 = vmatprep.subr.mxu0 0.0
    %306 = vmatpush1.msra.mxu0 0.0
    %307 = vmatprep.subr.mxu0 0.0
    %308 = vmatpush1.msra.mxu0 0.0
    %309 = vmatprep.subr.mxu0 0.0
    %310 = vmatpush1.msra.mxu0 0.0
    %311 = vmatprep.subr.mxu0 0.0
    %312 = vmatpush1.msra.mxu0 0.0
    %313 = vmatprep.subr.mxu0 0.0
    %314 = vmatpush1.msra.mxu0 0.0
    %315 = vmatprep.subr.mxu0 0.0
    %316 = vmatpush1.msra.mxu0 0.0
    %317 = vmatprep.subr.mxu0 0.0
    %318 = vmatpush1.msra.mxu0 0.0
    %319 = vmatprep.subr.mxu0 0.0
    %320 = vmatpush1.msra.mxu0 0.0
    %321 = vmatprep.subr.mxu0 0.0
    %322 = vmatpush1.msra.mxu0 0.0
    %323 = vmatprep.subr.mxu0 0.0
    %324 = vmatpush1.msra.mxu0 0.0
    %325 = vmatprep.subr.mxu0 0.0
    %326 = vmatpush1.msra.mxu0 0.0
    %327 = vmatprep.subr.mxu0 0.0
    %328 = vmatpush1.msra.mxu0 0.0
    %329 = vmatprep.subr.mxu0 0.0
    %330 = vmatpush1.msra.mxu0 0.0
    %331 = vmatprep.subr.mxu0 0.0
    %332 = vmatpush1.msra.mxu0 0.0
    %333 = vmatprep.subr.mxu0 0.0
    %334 = vmatpush1.msra.mxu0 0.0
    %335 = vmatprep.subr.mxu0 0.0
    %336 = vmatpush1.msra.mxu0 0.0
    %337 = vmatprep.subr.mxu0 0.0
    %338 = vmatpush1.msra.mxu0 0.0
    %339 = vmatprep.subr.mxu0 0.0
    %340 = vmatpush1.msra.mxu0 0.0
    %341 = vmatprep.subr.mxu0 0.0
    %342 = vmatpush1.msra.mxu0 0.0
    %343 = vmatprep.subr.mxu0 0.0
    %344 = vmatpush1.msra.mxu0 0.0
    %345 = vmatprep.subr.mxu0 0.0
    %346 = vmatpush1.msra.mxu0 0.0
    %347 = vmatprep.subr.mxu0 0.0
    %348 = vmatpush1.msra.mxu0 0.0
    %349 = vmatprep.subr.mxu0 0.0
    %350 = vmatpush1.msra.mxu0 0.0
    %351 = vmatprep.subr.mxu0 0.0
    %352 = vmatpush1.msra.mxu0 0.0
    %353 = vmatprep.mubr.f32.mxu0 0.0
    %354 = vmatmul.mubr.f32.gmra.mrb[0].mxu0 %v287
    %v355 = vpop.f32.mrb[0].mxu0
    %v356 = vadd.f32 0.0, %v355
    %v357 = vpop.f32.mrb[0].mxu0
    %358 = vdwg.mxu0
    %v360 = vrot.slane %v356, 7
    %v363 = vadd.f32 %v133, %v360
    %v364 = vadd.f32 %v138, %v356
    %v365 = vxor.u32 %v363, 2147483648
    %v366 = vxor.u32 %v364, 2147483648
    %v367 = vmul.f32 %v365, 1.442695
    %v368 = vpow.pop %v367
    %v369 = vmul.f32 %v366, 1.442695
    %v370 = vpow.pop %v369
    %v371 = vadd.f32 %v368, 1.0
    %v372 = vadd.f32 %v370, 1.0
    %v373 = vrcp.pop %v371
    %v374 = vmul.f32 1.0, %v373
    %v375 = vrcp.pop %v372
    %v376 = vmul.f32 1.0, %v375
    %v377 = vtanh.pop %v363
    %v378 = vtanh.pop %v364
    %v381 = vrot.slane %v266, 7
    %v382 = vrot.slane %v267, 7
    %v385 = vmul.f32 %v374, %v381
    %v386 = vmul.f32 %v376, %v382
    %389 = vrot.lane.b32.xlu0 %v377, 64
    %v390 = vpop.permute.xlu0 %389
    %391 = vrot.lane.b32.xlu0 %v378, 64
    %v392 = vpop.permute.xlu0 %391
    %v395 = vmul.f32 %v374, %v390
    %v396 = vmul.f32 %v376, %v392
    %399 = vrot.lane.b32.xlu0 %v395, 32
    %v400 = vpop.permute.xlu0 %399
    %401 = vrot.lane.b32.xlu0 %v396, 32
    %v402 = vpop.permute.xlu0 %401
    %v405 = vadd.f32 %v385, %v400
    %v406 = vadd.f32 %v386, %v402
    %v407 = vtanh.pop %v405
    %v408 = vtanh.pop %v406
    %411 = vrot.lane.b32.xlu0 %v407, 64
    %v412 = vpop.permute.xlu0 %411
    %413 = vrot.lane.b32.xlu0 %v408, 64
    %v414 = vpop.permute.xlu0 %413
    %v417 = vmul.f32 %v374, %v412
    %v418 = vmul.f32 %v376, %v414
    %v421 = vrot.slane %v417, 1
    %v422 = vsel %vm283, %v418, %v421
    %423 = vrot.lane.b32.xlu0 %v422, 32
    %v424 = vpop.permute.xlu0 %423
    %v425 = vsel %vm144, %v424, 0
    %427 = vmatprep.subr.mxu0 0.0
    %428 = vmatpush1.msra.mxu0 %v46
    %429 = vmatprep.subr.mxu0 0.0
    %430 = vmatpush1.msra.mxu0 %v47
    %431 = vmatprep.subr.mxu0 0.0
    %432 = vmatpush1.msra.mxu0 %v48
    %433 = vmatprep.subr.mxu0 0.0
    %434 = vmatpush1.msra.mxu0 %v49
    %435 = vmatprep.subr.mxu0 0.0
    %436 = vmatpush1.msra.mxu0 0.0
    %437 = vmatprep.subr.mxu0 0.0
    %438 = vmatpush1.msra.mxu0 0.0
    %439 = vmatprep.subr.mxu0 0.0
    %440 = vmatpush1.msra.mxu0 0.0
    %441 = vmatprep.subr.mxu0 0.0
    %442 = vmatpush1.msra.mxu0 0.0
    %443 = vmatprep.subr.mxu0 0.0
    %444 = vmatpush1.msra.mxu0 0.0
    %445 = vmatprep.subr.mxu0 0.0
    %446 = vmatpush1.msra.mxu0 0.0
    %447 = vmatprep.subr.mxu0 0.0
    %448 = vmatpush1.msra.mxu0 0.0
    %449 = vmatprep.subr.mxu0 0.0
    %450 = vmatpush1.msra.mxu0 0.0
    %451 = vmatprep.subr.mxu0 0.0
    %452 = vmatpush1.msra.mxu0 0.0
    %453 = vmatprep.subr.mxu0 0.0
    %454 = vmatpush1.msra.mxu0 0.0
    %455 = vmatprep.subr.mxu0 0.0
    %456 = vmatpush1.msra.mxu0 0.0
    %457 = vmatprep.subr.mxu0 0.0
    %458 = vmatpush1.msra.mxu0 0.0
    %459 = vmatprep.subr.mxu0 0.0
    %460 = vmatpush1.msra.mxu0 0.0
    %461 = vmatprep.subr.mxu0 0.0
    %462 = vmatpush1.msra.mxu0 0.0
    %463 = vmatprep.subr.mxu0 0.0
    %464 = vmatpush1.msra.mxu0 0.0
    %465 = vmatprep.subr.mxu0 0.0
    %466 = vmatpush1.msra.mxu0 0.0
    %467 = vmatprep.subr.mxu0 0.0
    %468 = vmatpush1.msra.mxu0 0.0
    %469 = vmatprep.subr.mxu0 0.0
    %470 = vmatpush1.msra.mxu0 0.0
    %471 = vmatprep.subr.mxu0 0.0
    %472 = vmatpush1.msra.mxu0 0.0
    %473 = vmatprep.subr.mxu0 0.0
    %474 = vmatpush1.msra.mxu0 0.0
    %475 = vmatprep.subr.mxu0 0.0
    %476 = vmatpush1.msra.mxu0 0.0
    %477 = vmatprep.subr.mxu0 0.0
    %478 = vmatpush1.msra.mxu0 0.0
    %479 = vmatprep.subr.mxu0 0.0
    %480 = vmatpush1.msra.mxu0 0.0
    %481 = vmatprep.subr.mxu0 0.0
    %482 = vmatpush1.msra.mxu0 0.0
    %483 = vmatprep.subr.mxu0 0.0
    %484 = vmatpush1.msra.mxu0 0.0
    %485 = vmatprep.subr.mxu0 0.0
    %486 = vmatpush1.msra.mxu0 0.0
    %487 = vmatprep.subr.mxu0 0.0
    %488 = vmatpush1.msra.mxu0 0.0
    %489 = vmatprep.subr.mxu0 0.0
    %490 = vmatpush1.msra.mxu0 0.0
    %491 = vmatprep.mubr.f32.mxu0 0.0
    %492 = vmatmul.mubr.f32.gmra.mrb[0].mxu0 %v425
    %v493 = vpop.f32.mrb[0].mxu0
    %v494 = vadd.f32 0.0, %v493
    %v495 = vpop.f32.mrb[0].mxu0
    %496 = vdwg.mxu0
    %v498 = vrot.slane %v494, 6
    %v499 = vrot.slane %v494, 7
    %v502 = vadd.f32 %v133, %v498
    %v503 = vadd.f32 %v138, %v499
    %v504 = vxor.u32 %v502, 2147483648
    %v505 = vxor.u32 %v503, 2147483648
    %v506 = vmul.f32 %v504, 1.442695
    %v507 = vpow.pop %v506
    %v508 = vmul.f32 %v505, 1.442695
    %v509 = vpow.pop %v508
    %v510 = vadd.f32 %v507, 1.0
    %v511 = vadd.f32 %v509, 1.0
    %v512 = vrcp.pop %v510
    %v513 = vmul.f32 1.0, %v512
    %v514 = vrcp.pop %v511
    %v515 = vmul.f32 1.0, %v514
    %v516 = vtanh.pop %v502
    %v517 = vtanh.pop %v503
    %v520 = vrot.slane %v405, 7
    %v521 = vrot.slane %v406, 7
    %v524 = vmul.f32 %v513, %v520
    %v525 = vmul.f32 %v515, %v521
    %528 = vrot.lane.b32.xlu0 %v516, 64
    %v529 = vpop.permute.xlu0 %528
    %530 = vrot.lane.b32.xlu0 %v517, 64
    %v531 = vpop.permute.xlu0 %530
    %v534 = vmul.f32 %v513, %v529
    %v535 = vmul.f32 %v515, %v531
    %538 = vrot.lane.b32.xlu0 %v534, 32
    %v539 = vpop.permute.xlu0 %538
    %540 = vrot.lane.b32.xlu0 %v535, 32
    %v541 = vpop.permute.xlu0 %540
    %v544 = vadd.f32 %v524, %v539
    %v545 = vadd.f32 %v525, %v541
    %v546 = vtanh.pop %v544
    %v547 = vtanh.pop %v545
    %550 = vrot.lane.b32.xlu0 %v546, 64
    %v551 = vpop.permute.xlu0 %550
    %552 = vrot.lane.b32.xlu0 %v547, 64
    %v553 = vpop.permute.xlu0 %552
    %v556 = vmul.f32 %v513, %v551
    %v557 = vmul.f32 %v515, %v553
    %v560 = vrot.slane %v556, 2
    %v561 = vrot.slane %v557, 1
    %v562 = vsel %vm283, %v561, %v560
    %563 = vrot.lane.b32.xlu0 %v562, 32
    %v564 = vpop.permute.xlu0 %563
    %v565 = vsel %vm144, %v564, 0
    %567 = vmatprep.subr.mxu0 0.0
    %568 = vmatpush1.msra.mxu0 %v46
    %569 = vmatprep.subr.mxu0 0.0
    %570 = vmatpush1.msra.mxu0 %v47
    %571 = vmatprep.subr.mxu0 0.0
    %572 = vmatpush1.msra.mxu0 %v48
    %573 = vmatprep.subr.mxu0 0.0
    %574 = vmatpush1.msra.mxu0 %v49
    %575 = vmatprep.subr.mxu0 0.0
    %576 = vmatpush1.msra.mxu0 0.0
    %577 = vmatprep.subr.mxu0 0.0
    %578 = vmatpush1.msra.mxu0 0.0
    %579 = vmatprep.subr.mxu0 0.0
    %580 = vmatpush1.msra.mxu0 0.0
    %581 = vmatprep.subr.mxu0 0.0
    %582 = vmatpush1.msra.mxu0 0.0
    %583 = vmatprep.subr.mxu0 0.0
    %584 = vmatpush1.msra.mxu0 0.0
    %585 = vmatprep.subr.mxu0 0.0
    %586 = vmatpush1.msra.mxu0 0.0
    %587 = vmatprep.subr.mxu0 0.0
    %588 = vmatpush1.msra.mxu0 0.0
    %589 = vmatprep.subr.mxu0 0.0
    %590 = vmatpush1.msra.mxu0 0.0
    %591 = vmatprep.subr.mxu0 0.0
    %592 = vmatpush1.msra.mxu0 0.0
    %593 = vmatprep.subr.mxu0 0.0
    %594 = vmatpush1.msra.mxu0 0.0
    %595 = vmatprep.subr.mxu0 0.0
    %596 = vmatpush1.msra.mxu0 0.0
    %597 = vmatprep.subr.mxu0 0.0
    %598 = vmatpush1.msra.mxu0 0.0
    %599 = vmatprep.subr.mxu0 0.0
    %600 = vmatpush1.msra.mxu0 0.0
    %601 = vmatprep.subr.mxu0 0.0
    %602 = vmatpush1.msra.mxu0 0.0
    %603 = vmatprep.subr.mxu0 0.0
    %604 = vmatpush1.msra.mxu0 0.0
    %605 = vmatprep.subr.mxu0 0.0
    %606 = vmatpush1.msra.mxu0 0.0
    %607 = vmatprep.subr.mxu0 0.0
    %608 = vmatpush1.msra.mxu0 0.0
    %609 = vmatprep.subr.mxu0 0.0
    %610 = vmatpush1.msra.mxu0 0.0
    %611 = vmatprep.subr.mxu0 0.0
    %612 = vmatpush1.msra.mxu0 0.0
    %613 = vmatprep.subr.mxu0 0.0
    %614 = vmatpush1.msra.mxu0 0.0
    %615 = vmatprep.subr.mxu0 0.0
    %616 = vmatpush1.msra.mxu0 0.0
    %617 = vmatprep.subr.mxu0 0.0
    %618 = vmatpush1.msra.mxu0 0.0
    %619 = vmatprep.subr.mxu0 0.0
    %620 = vmatpush1.msra.mxu0 0.0
    %621 = vmatprep.subr.mxu0 0.0
    %622 = vmatpush1.msra.mxu0 0.0
    %623 = vmatprep.subr.mxu0 0.0
    %624 = vmatpush1.msra.mxu0 0.0
    %625 = vmatprep.subr.mxu0 0.0
    %626 = vmatpush1.msra.mxu0 0.0
    %627 = vmatprep.subr.mxu0 0.0
    %628 = vmatpush1.msra.mxu0 0.0
    %629 = vmatprep.subr.mxu0 0.0
    %630 = vmatpush1.msra.mxu0 0.0
    %631 = vmatprep.mubr.f32.mxu0 0.0
    %632 = vmatmul.mubr.f32.gmra.mrb[0].mxu0 %v565
    %v633 = vpop.f32.mrb[0].mxu0
    %v634 = vadd.f32 0.0, %v633
    %v635 = vpop.f32.mrb[0].mxu0
    %636 = vdwg.mxu0
    %v638 = vrot.slane %v634, 5
    %v639 = vrot.slane %v634, 6
    %v642 = vadd.f32 %v133, %v638
    %v643 = vadd.f32 %v138, %v639
    %v644 = vxor.u32 %v642, 2147483648
    %v645 = vxor.u32 %v643, 2147483648
    %v646 = vmul.f32 %v644, 1.442695
    %v647 = vpow.pop %v646
    %v648 = vmul.f32 %v645, 1.442695
    %v649 = vpow.pop %v648
    %v650 = vadd.f32 %v647, 1.0
    %v651 = vadd.f32 %v649, 1.0
    %v652 = vrcp.pop %v650
    %v653 = vmul.f32 1.0, %v652
    %v654 = vrcp.pop %v651
    %v655 = vmul.f32 1.0, %v654
    %v656 = vtanh.pop %v642
    %v657 = vtanh.pop %v643
    %v660 = vrot.slane %v544, 7
    %v661 = vrot.slane %v545, 7
    %v664 = vmul.f32 %v653, %v660
    %v665 = vmul.f32 %v655, %v661
    %668 = vrot.lane.b32.xlu0 %v656, 64
    %v669 = vpop.permute.xlu0 %668
    %670 = vrot.lane.b32.xlu0 %v657, 64
    %v671 = vpop.permute.xlu0 %670
    %v674 = vmul.f32 %v653, %v669
    %v675 = vmul.f32 %v655, %v671
    %678 = vrot.lane.b32.xlu0 %v674, 32
    %v679 = vpop.permute.xlu0 %678
    %680 = vrot.lane.b32.xlu0 %v675, 32
    %v681 = vpop.permute.xlu0 %680
    %v684 = vadd.f32 %v664, %v679
    %v685 = vadd.f32 %v665, %v681
    %v686 = vtanh.pop %v684
    %v687 = vtanh.pop %v685
    %690 = vrot.lane.b32.xlu0 %v686, 64
    %v691 = vpop.permute.xlu0 %690
    %692 = vrot.lane.b32.xlu0 %v687, 64
    %v693 = vpop.permute.xlu0 %692
    %v696 = vmul.f32 %v653, %v691
    %v697 = vmul.f32 %v655, %v693
    %v700 = vrot.slane %v696, 3
    %v701 = vrot.slane %v697, 2
    %v702 = vsel %vm283, %v701, %v700
    %703 = vrot.lane.b32.xlu0 %v702, 32
    %v704 = vpop.permute.xlu0 %703
    %v705 = vsel %vm144, %v704, 0
    %707 = vmatprep.subr.mxu0 0.0
    %708 = vmatpush1.msra.mxu0 %v46
    %709 = vmatprep.subr.mxu0 0.0
    %710 = vmatpush1.msra.mxu0 %v47
    %711 = vmatprep.subr.mxu0 0.0
    %712 = vmatpush1.msra.mxu0 %v48
    %713 = vmatprep.subr.mxu0 0.0
    %714 = vmatpush1.msra.mxu0 %v49
    %715 = vmatprep.subr.mxu0 0.0
    %716 = vmatpush1.msra.mxu0 0.0
    %717 = vmatprep.subr.mxu0 0.0
    %718 = vmatpush1.msra.mxu0 0.0
    %719 = vmatprep.subr.mxu0 0.0
    %720 = vmatpush1.msra.mxu0 0.0
    %721 = vmatprep.subr.mxu0 0.0
    %722 = vmatpush1.msra.mxu0 0.0
    %723 = vmatprep.subr.mxu0 0.0
    %724 = vmatpush1.msra.mxu0 0.0
    %725 = vmatprep.subr.mxu0 0.0
    %726 = vmatpush1.msra.mxu0 0.0
    %727 = vmatprep.subr.mxu0 0.0
    %728 = vmatpush1.msra.mxu0 0.0
    %729 = vmatprep.subr.mxu0 0.0
    %730 = vmatpush1.msra.mxu0 0.0
    %731 = vmatprep.subr.mxu0 0.0
    %732 = vmatpush1.msra.mxu0 0.0
    %733 = vmatprep.subr.mxu0 0.0
    %734 = vmatpush1.msra.mxu0 0.0
    %735 = vmatprep.subr.mxu0 0.0
    %736 = vmatpush1.msra.mxu0 0.0
    %737 = vmatprep.subr.mxu0 0.0
    %738 = vmatpush1.msra.mxu0 0.0
    %739 = vmatprep.subr.mxu0 0.0
    %740 = vmatpush1.msra.mxu0 0.0
    %741 = vmatprep.subr.mxu0 0.0
    %742 = vmatpush1.msra.mxu0 0.0
    %743 = vmatprep.subr.mxu0 0.0
    %744 = vmatpush1.msra.mxu0 0.0
    %745 = vmatprep.subr.mxu0 0.0
    %746 = vmatpush1.msra.mxu0 0.0
    %747 = vmatprep.subr.mxu0 0.0
    %748 = vmatpush1.msra.mxu0 0.0
    %749 = vmatprep.subr.mxu0 0.0
    %750 = vmatpush1.msra.mxu0 0.0
    %751 = vmatprep.subr.mxu0 0.0
    %752 = vmatpush1.msra.mxu0 0.0
    %753 = vmatprep.subr.mxu0 0.0
    %754 = vmatpush1.msra.mxu0 0.0
    %755 = vmatprep.subr.mxu0 0.0
    %756 = vmatpush1.msra.mxu0 0.0
    %757 = vmatprep.subr.mxu0 0.0
    %758 = vmatpush1.msra.mxu0 0.0
    %759 = vmatprep.subr.mxu0 0.0
    %760 = vmatpush1.msra.mxu0 0.0
    %761 = vmatprep.subr.mxu0 0.0
    %762 = vmatpush1.msra.mxu0 0.0
    %763 = vmatprep.subr.mxu0 0.0
    %764 = vmatpush1.msra.mxu0 0.0
    %765 = vmatprep.subr.mxu0 0.0
    %766 = vmatpush1.msra.mxu0 0.0
    %767 = vmatprep.subr.mxu0 0.0
    %768 = vmatpush1.msra.mxu0 0.0
    %769 = vmatprep.subr.mxu0 0.0
    %770 = vmatpush1.msra.mxu0 0.0
    %771 = vmatprep.mubr.f32.mxu0 0.0
    %772 = vmatmul.mubr.f32.gmra.mrb[0].mxu0 %v705
    %v773 = vpop.f32.mrb[0].mxu0
    %v774 = vadd.f32 0.0, %v773
    %v775 = vpop.f32.mrb[0].mxu0
    %776 = vdwg.mxu0
    %v778 = vrot.slane %v774, 4
    %v779 = vrot.slane %v774, 5
    %v782 = vadd.f32 %v133, %v778
    %v783 = vadd.f32 %v138, %v779
    %v784 = vxor.u32 %v782, 2147483648
    %v785 = vxor.u32 %v783, 2147483648
    %v786 = vmul.f32 %v784, 1.442695
    %v787 = vpow.pop %v786
    %v788 = vmul.f32 %v785, 1.442695
    %v789 = vpow.pop %v788
    %v790 = vadd.f32 %v787, 1.0
    %v791 = vadd.f32 %v789, 1.0
    %v792 = vrcp.pop %v790
    %v793 = vmul.f32 1.0, %v792
    %v794 = vrcp.pop %v791
    %v795 = vmul.f32 1.0, %v794
    %v796 = vtanh.pop %v782
    %v797 = vtanh.pop %v783
    %v800 = vrot.slane %v684, 7
    %v801 = vrot.slane %v685, 7
    %v804 = vmul.f32 %v793, %v800
    %v805 = vmul.f32 %v795, %v801
    %808 = vrot.lane.b32.xlu0 %v796, 64
    %v809 = vpop.permute.xlu0 %808
    %810 = vrot.lane.b32.xlu0 %v797, 64
    %v811 = vpop.permute.xlu0 %810
    %v814 = vmul.f32 %v793, %v809
    %v815 = vmul.f32 %v795, %v811
    %818 = vrot.lane.b32.xlu0 %v814, 32
    %v819 = vpop.permute.xlu0 %818
    %820 = vrot.lane.b32.xlu0 %v815, 32
    %v821 = vpop.permute.xlu0 %820
    %v824 = vadd.f32 %v804, %v819
    %v825 = vadd.f32 %v805, %v821
    %v826 = vtanh.pop %v824
    %v827 = vtanh.pop %v825
    %830 = vrot.lane.b32.xlu0 %v826, 64
    %v831 = vpop.permute.xlu0 %830
    %832 = vrot.lane.b32.xlu0 %v827, 64
    %v833 = vpop.permute.xlu0 %832
    %v836 = vmul.f32 %v793, %v831
    %v837 = vmul.f32 %v795, %v833
    %v840 = vrot.slane %v836, 4
    %v841 = vrot.slane %v837, 3
    %v842 = vsel %vm283, %v841, %v840
    %843 = vrot.lane.b32.xlu0 %v842, 32
    %v844 = vpop.permute.xlu0 %843
    %v845 = vsel %vm144, %v844, 0
    %847 = vmatprep.subr.mxu0 0.0
    %848 = vmatpush1.msra.mxu0 %v46
    %849 = vmatprep.subr.mxu0 0.0
    %850 = vmatpush1.msra.mxu0 %v47
    %851 = vmatprep.subr.mxu0 0.0
    %852 = vmatpush1.msra.mxu0 %v48
    %853 = vmatprep.subr.mxu0 0.0
    %854 = vmatpush1.msra.mxu0 %v49
    %855 = vmatprep.subr.mxu0 0.0
    %856 = vmatpush1.msra.mxu0 0.0
    %857 = vmatprep.subr.mxu0 0.0
    %858 = vmatpush1.msra.mxu0 0.0
    %859 = vmatprep.subr.mxu0 0.0
    %860 = vmatpush1.msra.mxu0 0.0
    %861 = vmatprep.subr.mxu0 0.0
    %862 = vmatpush1.msra.mxu0 0.0
    %863 = vmatprep.subr.mxu0 0.0
    %864 = vmatpush1.msra.mxu0 0.0
    %865 = vmatprep.subr.mxu0 0.0
    %866 = vmatpush1.msra.mxu0 0.0
    %867 = vmatprep.subr.mxu0 0.0
    %868 = vmatpush1.msra.mxu0 0.0
    %869 = vmatprep.subr.mxu0 0.0
    %870 = vmatpush1.msra.mxu0 0.0
    %871 = vmatprep.subr.mxu0 0.0
    %872 = vmatpush1.msra.mxu0 0.0
    %873 = vmatprep.subr.mxu0 0.0
    %874 = vmatpush1.msra.mxu0 0.0
    %875 = vmatprep.subr.mxu0 0.0
    %876 = vmatpush1.msra.mxu0 0.0
    %877 = vmatprep.subr.mxu0 0.0
    %878 = vmatpush1.msra.mxu0 0.0
    %879 = vmatprep.subr.mxu0 0.0
    %880 = vmatpush1.msra.mxu0 0.0
    %881 = vmatprep.subr.mxu0 0.0
    %882 = vmatpush1.msra.mxu0 0.0
    %883 = vmatprep.subr.mxu0 0.0
    %884 = vmatpush1.msra.mxu0 0.0
    %885 = vmatprep.subr.mxu0 0.0
    %886 = vmatpush1.msra.mxu0 0.0
    %887 = vmatprep.subr.mxu0 0.0
    %888 = vmatpush1.msra.mxu0 0.0
    %889 = vmatprep.subr.mxu0 0.0
    %890 = vmatpush1.msra.mxu0 0.0
    %891 = vmatprep.subr.mxu0 0.0
    %892 = vmatpush1.msra.mxu0 0.0
    %893 = vmatprep.subr.mxu0 0.0
    %894 = vmatpush1.msra.mxu0 0.0
    %895 = vmatprep.subr.mxu0 0.0
    %896 = vmatpush1.msra.mxu0 0.0
    %897 = vmatprep.subr.mxu0 0.0
    %898 = vmatpush1.msra.mxu0 0.0
    %899 = vmatprep.subr.mxu0 0.0
    %900 = vmatpush1.msra.mxu0 0.0
    %901 = vmatprep.subr.mxu0 0.0
    %902 = vmatpush1.msra.mxu0 0.0
    %903 = vmatprep.subr.mxu0 0.0
    %904 = vmatpush1.msra.mxu0 0.0
    %905 = vmatprep.subr.mxu0 0.0
    %906 = vmatpush1.msra.mxu0 0.0
    %907 = vmatprep.subr.mxu0 0.0
    %908 = vmatpush1.msra.mxu0 0.0
    %909 = vmatprep.subr.mxu0 0.0
    %910 = vmatpush1.msra.mxu0 0.0
    %911 = vmatprep.mubr.f32.mxu0 0.0
    %912 = vmatmul.mubr.f32.gmra.mrb[0].mxu0 %v845
    %v913 = vpop.f32.mrb[0].mxu0
    %v914 = vadd.f32 0.0, %v913
    %v915 = vpop.f32.mrb[0].mxu0
    %916 = vdwg.mxu0
    %v918 = vrot.slane %v914, 3
    %v919 = vrot.slane %v914, 4
    %v922 = vadd.f32 %v133, %v918
    %v923 = vadd.f32 %v138, %v919
    %v924 = vxor.u32 %v922, 2147483648
    %v925 = vxor.u32 %v923, 2147483648
    %v926 = vmul.f32 %v924, 1.442695
    %v927 = vpow.pop %v926
    %v928 = vmul.f32 %v925, 1.442695
    %v929 = vpow.pop %v928
    %v930 = vadd.f32 %v927, 1.0
    %v931 = vadd.f32 %v929, 1.0
    %v932 = vrcp.pop %v930
    %v933 = vmul.f32 1.0, %v932
    %v934 = vrcp.pop %v931
    %v935 = vmul.f32 1.0, %v934
    %v936 = vtanh.pop %v922
    %v937 = vtanh.pop %v923
    %v940 = vrot.slane %v824, 7
    %v941 = vrot.slane %v825, 7
    %v944 = vmul.f32 %v933, %v940
    %v945 = vmul.f32 %v935, %v941
    %948 = vrot.lane.b32.xlu0 %v936, 64
    %v949 = vpop.permute.xlu0 %948
    %950 = vrot.lane.b32.xlu0 %v937, 64
    %v951 = vpop.permute.xlu0 %950
    %v954 = vmul.f32 %v933, %v949
    %v955 = vmul.f32 %v935, %v951
    %958 = vrot.lane.b32.xlu0 %v954, 32
    %v959 = vpop.permute.xlu0 %958
    %960 = vrot.lane.b32.xlu0 %v955, 32
    %v961 = vpop.permute.xlu0 %960
    %v964 = vadd.f32 %v944, %v959
    %v965 = vadd.f32 %v945, %v961
    %v966 = vtanh.pop %v964
    %v967 = vtanh.pop %v965
    %970 = vrot.lane.b32.xlu0 %v966, 64
    %v971 = vpop.permute.xlu0 %970
    %972 = vrot.lane.b32.xlu0 %v967, 64
    %v973 = vpop.permute.xlu0 %972
    %v976 = vmul.f32 %v933, %v971
    %v977 = vmul.f32 %v935, %v973
    %v980 = vrot.slane %v976, 5
    %v981 = vrot.slane %v977, 4
    %v982 = vsel %vm283, %v981, %v980
    %983 = vrot.lane.b32.xlu0 %v982, 32
    %v984 = vpop.permute.xlu0 %983
    %v985 = vsel %vm144, %v984, 0
    %987 = vmatprep.subr.mxu0 0.0
    %988 = vmatpush1.msra.mxu0 %v46
    %989 = vmatprep.subr.mxu0 0.0
    %990 = vmatpush1.msra.mxu0 %v47
    %991 = vmatprep.subr.mxu0 0.0
    %992 = vmatpush1.msra.mxu0 %v48
    %993 = vmatprep.subr.mxu0 0.0
    %994 = vmatpush1.msra.mxu0 %v49
    %995 = vmatprep.subr.mxu0 0.0
    %996 = vmatpush1.msra.mxu0 0.0
    %997 = vmatprep.subr.mxu0 0.0
    %998 = vmatpush1.msra.mxu0 0.0
    %999 = vmatprep.subr.mxu0 0.0
    %1000 = vmatpush1.msra.mxu0 0.0
    %1001 = vmatprep.subr.mxu0 0.0
    %1002 = vmatpush1.msra.mxu0 0.0
    %1003 = vmatprep.subr.mxu0 0.0
    %1004 = vmatpush1.msra.mxu0 0.0
    %1005 = vmatprep.subr.mxu0 0.0
    %1006 = vmatpush1.msra.mxu0 0.0
    %1007 = vmatprep.subr.mxu0 0.0
    %1008 = vmatpush1.msra.mxu0 0.0
    %1009 = vmatprep.subr.mxu0 0.0
    %1010 = vmatpush1.msra.mxu0 0.0
    %1011 = vmatprep.subr.mxu0 0.0
    %1012 = vmatpush1.msra.mxu0 0.0
    %1013 = vmatprep.subr.mxu0 0.0
    %1014 = vmatpush1.msra.mxu0 0.0
    %1015 = vmatprep.subr.mxu0 0.0
    %1016 = vmatpush1.msra.mxu0 0.0
    %1017 = vmatprep.subr.mxu0 0.0
    %1018 = vmatpush1.msra.mxu0 0.0
    %1019 = vmatprep.subr.mxu0 0.0
    %1020 = vmatpush1.msra.mxu0 0.0
    %1021 = vmatprep.subr.mxu0 0.0
    %1022 = vmatpush1.msra.mxu0 0.0
    %1023 = vmatprep.subr.mxu0 0.0
    %1024 = vmatpush1.msra.mxu0 0.0
    %1025 = vmatprep.subr.mxu0 0.0
    %1026 = vmatpush1.msra.mxu0 0.0
    %1027 = vmatprep.subr.mxu0 0.0
    %1028 = vmatpush1.msra.mxu0 0.0
    %1029 = vmatprep.subr.mxu0 0.0
    %1030 = vmatpush1.msra.mxu0 0.0
    %1031 = vmatprep.subr.mxu0 0.0
    %1032 = vmatpush1.msra.mxu0 0.0
    %1033 = vmatprep.subr.mxu0 0.0
    %1034 = vmatpush1.msra.mxu0 0.0
    %1035 = vmatprep.subr.mxu0 0.0
    %1036 = vmatpush1.msra.mxu0 0.0
    %1037 = vmatprep.subr.mxu0 0.0
    %1038 = vmatpush1.msra.mxu0 0.0
    %1039 = vmatprep.subr.mxu0 0.0
    %1040 = vmatpush1.msra.mxu0 0.0
    %1041 = vmatprep.subr.mxu0 0.0
    %1042 = vmatpush1.msra.mxu0 0.0
    %1043 = vmatprep.subr.mxu0 0.0
    %1044 = vmatpush1.msra.mxu0 0.0
    %1045 = vmatprep.subr.mxu0 0.0
    %1046 = vmatpush1.msra.mxu0 0.0
    %1047 = vmatprep.subr.mxu0 0.0
    %1048 = vmatpush1.msra.mxu0 0.0
    %1049 = vmatprep.subr.mxu0 0.0
    %1050 = vmatpush1.msra.mxu0 0.0
    %1051 = vmatprep.mubr.f32.mxu0 0.0
    %1052 = vmatmul.mubr.f32.gmra.mrb[0].mxu0 %v985
    %v1053 = vpop.f32.mrb[0].mxu0
    %v1054 = vadd.f32 0.0, %v1053
    %v1055 = vpop.f32.mrb[0].mxu0
    %1056 = vdwg.mxu0
    %v1058 = vrot.slane %v1054, 2
    %v1059 = vrot.slane %v1054, 3
    %v1062 = vadd.f32 %v133, %v1058
    %v1063 = vadd.f32 %v138, %v1059
    %v1064 = vxor.u32 %v1062, 2147483648
    %v1065 = vxor.u32 %v1063, 2147483648
    %v1066 = vmul.f32 %v1064, 1.442695
    %v1067 = vpow.pop %v1066
    %v1068 = vmul.f32 %v1065, 1.442695
    %v1069 = vpow.pop %v1068
    %v1070 = vadd.f32 %v1067, 1.0
    %v1071 = vadd.f32 %v1069, 1.0
    %v1072 = vrcp.pop %v1070
    %v1073 = vmul.f32 1.0, %v1072
    %v1074 = vrcp.pop %v1071
    %v1075 = vmul.f32 1.0, %v1074
    %v1076 = vtanh.pop %v1062
    %v1077 = vtanh.pop %v1063
    %v1080 = vrot.slane %v964, 7
    %v1081 = vrot.slane %v965, 7
    %v1084 = vmul.f32 %v1073, %v1080
    %v1085 = vmul.f32 %v1075, %v1081
    %1088 = vrot.lane.b32.xlu0 %v1076, 64
    %v1089 = vpop.permute.xlu0 %1088
    %1090 = vrot.lane.b32.xlu0 %v1077, 64
    %v1091 = vpop.permute.xlu0 %1090
    %v1094 = vmul.f32 %v1073, %v1089
    %v1095 = vmul.f32 %v1075, %v1091
    %1098 = vrot.lane.b32.xlu0 %v1094, 32
    %v1099 = vpop.permute.xlu0 %1098
    %1100 = vrot.lane.b32.xlu0 %v1095, 32
    %v1101 = vpop.permute.xlu0 %1100
    %v1104 = vadd.f32 %v1084, %v1099
    %v1105 = vadd.f32 %v1085, %v1101
    %v1106 = vtanh.pop %v1104
    %v1107 = vtanh.pop %v1105
    %1110 = vrot.lane.b32.xlu0 %v1106, 64
    %v1111 = vpop.permute.xlu0 %1110
    %1112 = vrot.lane.b32.xlu0 %v1107, 64
    %v1113 = vpop.permute.xlu0 %1112
    %v1116 = vmul.f32 %v1073, %v1111
    %v1117 = vmul.f32 %v1075, %v1113
    %v1120 = vrot.slane %v1116, 6
    %v1121 = vrot.slane %v1117, 5
    %v1122 = vsel %vm283, %v1121, %v1120
    %1123 = vrot.lane.b32.xlu0 %v1122, 32
    %v1124 = vpop.permute.xlu0 %1123
    %v1125 = vsel %vm144, %v1124, 0
    %1127 = vmatprep.subr.mxu0 0.0
    %1128 = vmatpush1.msra.mxu0 %v46
    %1129 = vmatprep.subr.mxu0 0.0
    %1130 = vmatpush1.msra.mxu0 %v47
    %1131 = vmatprep.subr.mxu0 0.0
    %1132 = vmatpush1.msra.mxu0 %v48
    %1133 = vmatprep.subr.mxu0 0.0
    %1134 = vmatpush1.msra.mxu0 %v49
    %1135 = vmatprep.subr.mxu0 0.0
    %1136 = vmatpush1.msra.mxu0 0.0
    %1137 = vmatprep.subr.mxu0 0.0
    %1138 = vmatpush1.msra.mxu0 0.0
    %1139 = vmatprep.subr.mxu0 0.0
    %1140 = vmatpush1.msra.mxu0 0.0
    %1141 = vmatprep.subr.mxu0 0.0
    %1142 = vmatpush1.msra.mxu0 0.0
    %1143 = vmatprep.subr.mxu0 0.0
    %1144 = vmatpush1.msra.mxu0 0.0
    %1145 = vmatprep.subr.mxu0 0.0
    %1146 = vmatpush1.msra.mxu0 0.0
    %1147 = vmatprep.subr.mxu0 0.0
    %1148 = vmatpush1.msra.mxu0 0.0
    %1149 = vmatprep.subr.mxu0 0.0
    %1150 = vmatpush1.msra.mxu0 0.0
    %1151 = vmatprep.subr.mxu0 0.0
    %1152 = vmatpush1.msra.mxu0 0.0
    %1153 = vmatprep.subr.mxu0 0.0
    %1154 = vmatpush1.msra.mxu0 0.0
    %1155 = vmatprep.subr.mxu0 0.0
    %1156 = vmatpush1.msra.mxu0 0.0
    %1157 = vmatprep.subr.mxu0 0.0
    %1158 = vmatpush1.msra.mxu0 0.0
    %1159 = vmatprep.subr.mxu0 0.0
    %1160 = vmatpush1.msra.mxu0 0.0
    %1161 = vmatprep.subr.mxu0 0.0
    %1162 = vmatpush1.msra.mxu0 0.0
    %1163 = vmatprep.subr.mxu0 0.0
    %1164 = vmatpush1.msra.mxu0 0.0
    %1165 = vmatprep.subr.mxu0 0.0
    %1166 = vmatpush1.msra.mxu0 0.0
    %1167 = vmatprep.subr.mxu0 0.0
    %1168 = vmatpush1.msra.mxu0 0.0
    %1169 = vmatprep.subr.mxu0 0.0
    %1170 = vmatpush1.msra.mxu0 0.0
    %1171 = vmatprep.subr.mxu0 0.0
    %1172 = vmatpush1.msra.mxu0 0.0
    %1173 = vmatprep.subr.mxu0 0.0
    %1174 = vmatpush1.msra.mxu0 0.0
    %1175 = vmatprep.subr.mxu0 0.0
    %1176 = vmatpush1.msra.mxu0 0.0
    %1177 = vmatprep.subr.mxu0 0.0
    %1178 = vmatpush1.msra.mxu0 0.0
    %1179 = vmatprep.subr.mxu0 0.0
    %1180 = vmatpush1.msra.mxu0 0.0
    %1181 = vmatprep.subr.mxu0 0.0
    %1182 = vmatpush1.msra.mxu0 0.0
    %1183 = vmatprep.subr.mxu0 0.0
    %1184 = vmatpush1.msra.mxu0 0.0
    %1185 = vmatprep.subr.mxu0 0.0
    %1186 = vmatpush1.msra.mxu0 0.0
    %1187 = vmatprep.subr.mxu0 0.0
    %1188 = vmatpush1.msra.mxu0 0.0
    %1189 = vmatprep.subr.mxu0 0.0
    %1190 = vmatpush1.msra.mxu0 0.0
    %1191 = vmatprep.mubr.f32.mxu0 0.0
    %1192 = vmatmul.mubr.f32.gmra.mrb[0].mxu0 %v1125
    %v1193 = vpop.f32.mrb[0].mxu0
    %v1194 = vadd.f32 0.0, %v1193
    %v1195 = vpop.f32.mrb[0].mxu0
    %1196 = vdwg.mxu0
    %v1198 = vrot.slane %v1194, 1
    %v1199 = vrot.slane %v1194, 2
    %v1202 = vadd.f32 %v133, %v1198
    %v1203 = vadd.f32 %v138, %v1199
    %v1204 = vxor.u32 %v1202, 2147483648
    %v1205 = vxor.u32 %v1203, 2147483648
    %v1206 = vmul.f32 %v1204, 1.442695
    %v1207 = vpow.pop %v1206
    %v1208 = vmul.f32 %v1205, 1.442695
    %v1209 = vpow.pop %v1208
    %v1210 = vadd.f32 %v1207, 1.0
    %v1211 = vadd.f32 %v1209, 1.0
    %v1212 = vrcp.pop %v1210
    %v1213 = vmul.f32 1.0, %v1212
    %v1214 = vrcp.pop %v1211
    %v1215 = vmul.f32 1.0, %v1214
    %v1216 = vtanh.pop %v1202
    %v1217 = vtanh.pop %v1203
    %v1220 = vrot.slane %v1104, 7
    %v1221 = vrot.slane %v1105, 7
    %v1224 = vmul.f32 %v1213, %v1220
    %v1225 = vmul.f32 %v1215, %v1221
    %1228 = vrot.lane.b32.xlu0 %v1216, 64
    %v1229 = vpop.permute.xlu0 %1228
    %1230 = vrot.lane.b32.xlu0 %v1217, 64
    %v1231 = vpop.permute.xlu0 %1230
    %v1234 = vmul.f32 %v1213, %v1229
    %v1235 = vmul.f32 %v1215, %v1231
    %1238 = vrot.lane.b32.xlu0 %v1234, 32
    %v1239 = vpop.permute.xlu0 %1238
    %1240 = vrot.lane.b32.xlu0 %v1235, 32
    %v1241 = vpop.permute.xlu0 %1240
    %v1244 = vadd.f32 %v1224, %v1239
    %v1245 = vadd.f32 %v1225, %v1241
    %v1246 = vtanh.pop %v1244
    %v1247 = vtanh.pop %v1245
    %1250 = vrot.lane.b32.xlu0 %v1246, 64
    %v1251 = vpop.permute.xlu0 %1250
    %1252 = vrot.lane.b32.xlu0 %v1247, 64
    %v1253 = vpop.permute.xlu0 %1252
    %v1256 = vmul.f32 %v1213, %v1251
    %v1257 = vmul.f32 %v1215, %v1253
    %v1260 = vrot.slane %v1257, 7
    %1261 = vrot.lane.b32.xlu0 %v1256, 32
    %v1262 = vpop.permute.xlu0 %1261
    %1263 = vrot.lane.b32.xlu0 %v1260, 32
    %v1264 = vpop.permute.xlu0 %1263
    %vm1267 = vcmask 261127
    %1268 = vst.msk [vmem:[%s4 - $0x7] sm:$0x80] %vm1267, %v1262
    %vm1269 = vcmask 253952
    %1270 = vst.msk [vmem:[%s4 + $0x1] sm:$0x1] %vm1269, %v1264
    %v1273 = vrot.slane %v1245, 7
    %1274 = vrot.lane.b32.xlu0 %v1244, 96
    %v1275 = vpop.permute.xlu0 %1274
    %1276 = vrot.lane.b32.xlu0 %v1273, 96
    %v1277 = vpop.permute.xlu0 %1276
    %s1280 = scalar_lea.vmem %s4, 2
    %1281 = vst.msk [vmem:[%s1280 - $0x7] sm:$0x80] %vm1267, %v1275
    %1282 = vst.msk [vmem:[%s1280 + $0x1] sm:$0x1] %vm1269, %v1277
    %v1283 = vlaneseq
    %v1284 = vshrl.u32 %v1283, 7
    %v1285 = vsub.s32 0, %v1284
    %v1286 = vrot.slane %v51, %v1285
    %1288 = vrot.lane.b32.xlu0 %v1286, 96
    %v1289 = vpop.permute.xlu0 %1288
    %v1291 = vmul.f32 %v1256, %v1289
    %v1292 = vmul.f32 %v1257, %v1289
    %v1295 = vrot.slane %v1292, 7
    %1296 = vrot.lane.b32.xlu0 %v1291, 32
    %v1297 = vpop.permute.xlu0 %1296
    %1298 = vrot.lane.b32.xlu0 %v1295, 32
    %v1299 = vpop.permute.xlu0 %1298
    %v1302 = vsel %vm1267, %v1297, 0.0
    %1303 = vadd.xlane.f32.xlu0 %v1302
    %v1304 = vpop.xlane.xlu0 %1303
    %v1305 = vsel %vm1269, %v1299, 0.0
    %1306 = vadd.xlane.f32.xlu0 %v1305
    %v1307 = vpop.xlane.xlu0 %1306
    %v1308 = vlaneseq
    %v1309 = vshrl.u32 %v1308, 7
    %v1310 = vsub.s32 0, %v1309
    %v1311 = vrot.slane %v52, %v1310
    %v1312 = vadd.f32 %v1304, %v1311
    %v1313 = vadd.f32 %v1307, %v1311
    %vm1314 = vcmask 7175
    %1315 = vst.msk [vmem:[%s3 - $0x7] sm:$0x80] %vm1314, %v1312
    %vm1316 = vcmask 0
    %1317 = vst.msk [vmem:[%s3 + $0x1] sm:$0x1] %vm1316, %v1313
    // Predicated region
    $region22: #{lstm_forward.1} parent=1 // pred_check
      _
    $region23: #{lstm_forward.1} parent=1 // pred_check_branch
      %1319 = sbr.rel (0) target = $region25
    $region24: #{lstm_forward.1} parent=1 // pred_region
      _
    $region25: #{lstm_forward.1} parent=1 // pred_fallthru
      _
    // Predicated region
    $region26: #{lstm_forward.1} parent=1 // pred_check
      _
    $region27: #{lstm_forward.1} parent=1 // pred_check_branch
      %1321 = sbr.rel (0) target = $region29
    $region28: #{lstm_forward.1} parent=1 // pred_region
      _
    $region29: #{lstm_forward.1} parent=1 // pred_fallthru
      _
    // Predicated region
    $region30: #{lstm_forward.1} parent=1 // pred_check
      _
    $region31: #{lstm_forward.1} parent=1 // pred_check_branch
      %1323 = sbr.rel (0) target = $region33
    $region32: #{lstm_forward.1} parent=1 // pred_region
      _
    $region33: #{lstm_forward.1} parent=1 // pred_fallthru
      _
    // Predicated region
    $region34: #{lstm_forward.1} parent=1 // pred_check
      _
    $region35: #{lstm_forward.1} parent=1 // pred_check_branch
      %1325 = sbr.rel (0) target = $region37
    $region36: #{lstm_forward.1} parent=1 // pred_region
      _
    $region37: #{lstm_forward.1} parent=1 // pred_fallthru
      _
    %1326 = vsyncpa [#allocation3], 1
    %1327 = vsyncpa [#allocation5], 1

</llo_original>
